<compile_context>
chip_gen: v7x
topology: tpu7x:2x2x1
jax: 0.10.0
libtpu: 0.0.40
codegen_flags: <defaults>
</compile_context>

<pallas_src>
import math

import jax
import jax.numpy as jnp
from jax.experimental import pallas as pl
from jax.experimental.pallas import tpu as pltpu

_INV_SQRT2 = 1.0 / math.sqrt(2.0)


def _round_up(x, m):
    return ((x + m - 1) // m) * m


def _sublane_multiple(dtype):
    # f32 -> 8, bf16 -> 16, int8/fp8 -> 32 (sub-32-bit dtypes pack along sublanes).
    itemsize = jnp.dtype(dtype).itemsize
    return 8 * max(1, 4 // itemsize)


def _vmem_budget_bytes():
    """Generation-aware usable-VMEM cap (leave headroom for Mosaic scratch)."""
    try:
        cap = int(pltpu.get_tpu_info().vmem_capacity_bytes)
    except Exception:
        cap = 64 << 20          # conservative fallback: valid on v5e/v6e/v7x
    # v5e/v6e (128 MiB) -> up to ~100 MiB; v7x (64 MiB) -> ~52 MiB usable.
    return max(32 << 20, min(100 << 20, cap - (12 << 20)))


def _mlp_kernel(x_ref, w1_ref, b1_ref, w2_ref, b2_ref, o_ref, acc_ref):
    # x_ref: (tm, C_in)        w1_ref: (C_in, th)   b1_ref: (1, th)
    # w2_ref: (th, C_out_pad)  b2_ref: (1, C_out_pad)
    # o_ref:  (tm, C_out_pad)  acc_ref: (tm, C_out_pad) f32 scratch
    h_idx = pl.program_id(1)

    @pl.when(h_idx == 0)
    def _init():
        acc_ref[...] = jnp.zeros_like(acc_ref)

    # fc1 chunk on the MXU; accumulate in f32 regardless of input dtype.
    h = jnp.dot(x_ref[...], w1_ref[...], preferred_element_type=jnp.float32)
    h = h + b1_ref[...].astype(jnp.float32)
    # Exact (erf) GELU in f32 — matches torch.nn.GELU() defaults.
    h = 0.5 * h * (1.0 + jax.lax.erf(h * _INV_SQRT2))

    # Partial fc2 for this H-chunk, accumulated in f32 scratch.
    acc_ref[...] += jnp.dot(h.astype(w2_ref.dtype), w2_ref[...],
                            preferred_element_type=jnp.float32)

    @pl.when(h_idx == pl.num_programs(1) - 1)
    def _finalize():
        y = acc_ref[...] + b2_ref[...].astype(jnp.float32)
        o_ref[...] = y.astype(o_ref.dtype)
    # Dropout with p=0.0 / eval is the identity — nothing to emit in-kernel.


def mlp_pallas(x, w1, b1, w2, b2, *, tm=None, th=None, x_buffers=2,
               vmem_limit_bytes=None):
    """x: (B, N, C_in); w1: (C_in, H); b1: (H,); w2: (H, C_out); b2: (C_out,).

    Weights are stored (in, out), i.e. the transpose of nn.Linear's (out, in).
    tm: row tile (auto if None).  th: hidden-dim chunk (auto if None).
    """
    B, N, C_in = x.shape
    H = w1.shape[1]
    C_out = w2.shape[1]
    M = B * N

    in_item = jnp.dtype(x.dtype).itemsize
    w_item = jnp.dtype(w1.dtype).itemsize
    out_item = in_item
    sub = _sublane_multiple(x.dtype)

    budget = _vmem_budget_bytes()

    # Lane-dense channel axes: pad H and C_out to multiples of 128.
    C_out_pad = _round_up(C_out, 128)
    H128 = _round_up(H, 128)

    def footprint(tm_, th_, n_h_):
        nb_w = 2 if n_h_ > 1 else 1           # weight chunks double-buffer only if they vary
        f = max(2, x_buffers) * tm_ * C_in * in_item      # x row tiles
        f += nb_w * (C_in + 1) * th_ * w_item             # W1 + b1 chunks
        f += nb_w * th_ * C_out_pad * w_item              # W2 chunk
        f += C_out_pad * w_item                           # b2
        f += 2 * tm_ * C_out_pad * out_item               # output tile
        f += tm_ * C_out_pad * 4                          # f32 accumulator scratch
        f += tm_ * th_ * 6                                # live f32 h + its cast
        return f

    def clamp_tm(t):
        return max(sub, _round_up(min(t, _round_up(M, sub)), sub))

    def th_for(tm_):
        if th is not None:
            return max(128, _round_up(th, 128))
        t = H128
        while t > 128 and footprint(tm_, t, _round_up(H, t) // t) > budget:
            t = _round_up(t // 2, 128)
        return t

    # Tile selection: keep the row tile big, chunk H first when VMEM-bound.
    tm_candidates = [clamp_tm(tm)] if tm is not None else \
        [clamp_tm(t) for t in (512, 256, 128, 64, 32, 16, 8)]
    tm_eff, th_eff = tm_candidates[0], th_for(tm_candidates[0])
    for t in tm_candidates:
        cand = th_for(t)
        if footprint(t, cand, _round_up(H, cand) // cand) <= budget:
            tm_eff, th_eff = t, cand
            break

    M_pad = _round_up(M, tm_eff)
    H_full = _round_up(H, th_eff)
    n_m = M_pad // tm_eff
    n_h = H_full // th_eff

    # TODO(synk): on v7x (2 TensorCores) prefer an even n_m, or grid over C_out
    # when M is tiny, so both cores stay busy and don't duplicate weight DMA.

    # ---- zero-pad operands (exact: GELU(0)=0; zero rows/cols contribute 0) ----
    x2d = x.reshape(M, C_in)
    if M_pad != M:
        x2d = jnp.pad(x2d, ((0, M_pad - M), (0, 0)))
    w1p = w1 if H_full == H else jnp.pad(w1, ((0, 0), (0, H_full - H)))
    b1p = (b1 if H_full == H else jnp.pad(b1, (0, H_full - H))).reshape(1, H_full)
    if H_full != H or C_out_pad != C_out:
        w2p = jnp.pad(w2, ((0, H_full - H), (0, C_out_pad - C_out)))
    else:
        w2p = w2
    b2p = (b2 if C_out_pad == C_out else jnp.pad(b2, (0, C_out_pad - C_out)))
    b2p = b2p.reshape(1, C_out_pad)

    if vmem_limit_bytes is None:
        need = footprint(tm_eff, th_eff, n_h)
        vmem_limit_bytes = min(budget, max(32 << 20, int(1.4 * need) + (4 << 20)))

    cost = pl.CostEstimate(
        flops=2 * M * (C_in * H + H * C_out),
        transcendentals=M * H,
        bytes_accessed=(x2d.size * in_item
                        + (w1p.size + b1p.size + w2p.size + b2p.size) * w_item
                        + M_pad * C_out_pad * out_item),
    )

    def weight_spec(shape, index_map):
        # Grid-constant operands: single-buffer (no wasted VMEM). Varying
        # operands keep the default double-buffered pipeline.
        if n_h == 1:
            return pl.BlockSpec(shape, index_map, pipeline_mode=pl.Buffered(1))
        return pl.BlockSpec(shape, index_map)

    if x_buffers == 2:
        x_spec = pl.BlockSpec((tm_eff, C_in), lambda i, h: (i, 0))
    else:
        x_spec = pl.BlockSpec((tm_eff, C_in), lambda i, h: (i, 0),
                              pipeline_mode=pl.Buffered(x_buffers))

    out2d = pl.pallas_call(
        _mlp_kernel,
        out_shape=jax.ShapeDtypeStruct((M_pad, C_out_pad), x.dtype),
        grid_spec=pltpu.PrefetchScalarGridSpec(
            num_scalar_prefetch=0,
            grid=(n_m, n_h),
            in_specs=[
                x_spec,                                              # row tile of x
                weight_spec((C_in, th_eff), lambda i, h: (0, h)),    # W1 chunk
                weight_spec((1, th_eff), lambda i, h: (0, h)),       # b1 chunk
                weight_spec((th_eff, C_out_pad), lambda i, h: (h, 0)),  # W2 chunk
                pl.BlockSpec((1, C_out_pad), lambda i, h: (0, 0),
                             pipeline_mode=pl.Buffered(1)),          # b2
            ],
            out_specs=pl.BlockSpec((tm_eff, C_out_pad), lambda i, h: (i, 0)),
            scratch_shapes=[pltpu.VMEM((tm_eff, C_out_pad), jnp.float32)],
        ),
        compiler_params=pltpu.CompilerParams(
            dimension_semantics=("parallel", "arbitrary"),
            vmem_limit_bytes=int(vmem_limit_bytes),
        ),
        cost_estimate=cost,
    )(x2d, w1p, b1p, w2p, b2p)

    return out2d[:M, :C_out].reshape(B, N, C_out)


def init_mlp_params(key, in_features, hidden_features, out_features,
                    dtype=jnp.float32):
    """Deterministic init mimicking nn.Linear bounds; weights stored (in, out)."""
    k1, k2, k3, k4 = jax.random.split(key, 4)
    lim1 = 1.0 / math.sqrt(in_features)
    lim2 = 1.0 / math.sqrt(hidden_features)
    w1 = jax.random.uniform(k1, (in_features, hidden_features), dtype, -lim1, lim1)
    b1 = jax.random.uniform(k2, (hidden_features,), dtype, -lim1, lim1)
    w2 = jax.random.uniform(k3, (hidden_features, out_features), dtype, -lim2, lim2)
    b2 = jax.random.uniform(k4, (out_features,), dtype, -lim2, lim2)
    return w1, b1, w2, b2


def _ref_mlp(x, w1, b1, w2, b2):
    """Pure-JAX f32 reference: exact erf GELU, drop=0.0 -> identity."""
    xf = x.astype(jnp.float32)
    h = xf @ w1.astype(jnp.float32) + b1.astype(jnp.float32)
    h = 0.5 * h * (1.0 + jax.lax.erf(h / jnp.sqrt(2.0)))
    return h @ w2.astype(jnp.float32) + b2.astype(jnp.float32)


if __name__ == "__main__":
    key = jax.random.PRNGKey(0)
    kx1, kp1, kx2, kp2, kx3, kp3 = jax.random.split(key, 6)

    # ---- Test 1: small f32 problem (tile clamps down, single grid step) ----
    B, N, C_in, H, C_out = 2, 8, 32, 64, 32
    x = jax.random.normal(kx1, (B, N, C_in), dtype=jnp.float32)
    w1, b1, w2, b2 = init_mlp_params(kp1, C_in, H, C_out, dtype=jnp.float32)

    y = jax.block_until_ready(mlp_pallas(x, w1, b1, w2, b2))
    y_ref = _ref_mlp(x, w1, b1, w2, b2)
    assert y.shape == (B, N, C_out)
    assert jnp.allclose(y, y_ref, atol=1e-5, rtol=1e-5), "f32 mismatch"

    # ---- Test 2: bf16 matmuls, non-divisible token count (padding + multi-M
    # grid, bf16 sublane rounding), f32 accumulation inside the kernel ----
    B2, N2, C_in2, H2, C_out2 = 2, 13, 32, 96, 48
    x2 = jax.random.normal(kx2, (B2, N2, C_in2), dtype=jnp.float32).astype(jnp.bfloat16)
    w1b, b1b, w2b, b2b = init_mlp_params(kp2, C_in2, H2, C_out2, dtype=jnp.bfloat16)

    y2 = jax.block_until_ready(mlp_pallas(x2, w1b, b1b, w2b, b2b, tm=16))
    y2_ref = _ref_mlp(x2, w1b, b1b, w2b, b2b)
    assert y2.shape == (B2, N2, C_out2)
    assert jnp.allclose(y2.astype(jnp.float32), y2_ref, atol=0.1, rtol=0.1), \
        "bf16 mismatch"

    # ---- Test 3: force H-chunking (th=128, two reduction steps) + padded
    # C_out -> exercises the accumulator / pl.when init / finalize path ----
    B3, N3, C_in3, H3, C_out3 = 2, 40, 64, 256, 160
    x3 = jax.random.normal(kx3, (B3, N3, C_in3), dtype=jnp.float32)
    w1c, b1c, w2c, b2c = init_mlp_params(kp3, C_in3, H3, C_out3, dtype=jnp.float32)

    y3 = jax.block_until_ready(mlp_pallas(x3, w1c, b1c, w2c, b2c, th=128))
    y3_ref = _ref_mlp(x3, w1c, b1c, w2c, b2c)
    assert y3.shape == (B3, N3, C_out3)
    assert jnp.allclose(y3, y3_ref, atol=1e-4, rtol=1e-4), "H-chunked mismatch"

    print("KERNEL_OK")
</pallas_src>

<mosaic_0001>
module attributes {stable_mosaic.version = 11 : i64} {
  func.func @_mlp_kernel(%arg0: i32, %arg1: i32, %arg2: memref<16x32xf32, #tpu.memory_space<vmem>>, %arg3: memref<32x128xf32, #tpu.memory_space<vmem>>, %arg4: memref<1x128xf32, #tpu.memory_space<vmem>>, %arg5: memref<128x128xf32, #tpu.memory_space<vmem>>, %arg6: memref<1x128xf32, #tpu.memory_space<vmem>>, %arg7: memref<16x128xf32, #tpu.memory_space<vmem>>, %arg8: memref<16x128xf32, #tpu.memory_space<vmem>>) attributes {dimension_semantics = [#tpu.dimension_semantics<parallel>, #tpu.dimension_semantics<arbitrary>], iteration_bounds = array<i64: 1, 1>, scalar_prefetch = 0 : i64, scratch_operands = 1 : i64, tpu.core_type = #tpu.core_type<tc>, window_params = [{transform_indices = @transform_0, window_bounds = array<i64: 16, 32>}, {pipeline_mode = #tpu.pipeline_mode<synchronous>, transform_indices = @transform_1, window_bounds = array<i64: 32, 128>}, {pipeline_mode = #tpu.pipeline_mode<synchronous>, transform_indices = @transform_2, window_bounds = array<i64: 1, 128>}, {pipeline_mode = #tpu.pipeline_mode<synchronous>, transform_indices = @transform_3, window_bounds = array<i64: 128, 128>}, {pipeline_mode = #tpu.pipeline_mode<synchronous>, transform_indices = @transform_4, window_bounds = array<i64: 1, 128>}, {transform_indices = @transform_5, window_bounds = array<i64: 16, 128>}]} {
    %c0_i32 = arith.constant 0 : i32
    %0 = arith.cmpi eq, %arg1, %c0_i32 : i32
    %1 = arith.extui %0 : i1 to i32
    %c0_i32_0 = arith.constant 0 : i32
    %2 = arith.cmpi ne, %1, %c0_i32_0 : i32
    scf.if %2 {
      %cst_18 = arith.constant 0.000000e+00 : f32
      %25 = vector.broadcast %cst_18 : f32 to vector<16x128xf32>
      %c0_19 = arith.constant 0 : index
      %c0_20 = arith.constant 0 : index
      %26 = vector.load %arg8[%c0_19, %c0_20] : memref<16x128xf32, #tpu.memory_space<vmem>>, vector<16x128xf32>
      tpu.vector_store %arg8[%c0_19, %c0_20], %25 {strides = array<i32>} : memref<16x128xf32, #tpu.memory_space<vmem>>, vector<16x128xf32>,
    } else {
    }
    %c0 = arith.constant 0 : index
    %c0_1 = arith.constant 0 : index
    %3 = vector.load %arg2[%c0, %c0_1] : memref<16x32xf32, #tpu.memory_space<vmem>>, vector<16x32xf32>
    %c0_2 = arith.constant 0 : index
    %c0_3 = arith.constant 0 : index
    %4 = vector.load %arg3[%c0_2, %c0_3] : memref<32x128xf32, #tpu.memory_space<vmem>>, vector<32x128xf32>
    %cst = arith.constant dense<0.000000e+00> : vector<16x128xf32>
    %5 = tpu.matmul %3, %4, %cst {dimension_numbers = #tpu.dot_dimension_numbers<[1], [0], [0], [1], [0, 0, 1, 1], [], []>} : vector<16x32xf32>, vector<32x128xf32>, vector<16x128xf32> -> vector<16x128xf32>
    %c0_4 = arith.constant 0 : index
    %c0_5 = arith.constant 0 : index
    %6 = vector.load %arg4[%c0_4, %c0_5] : memref<1x128xf32, #tpu.memory_space<vmem>>, vector<1x128xf32>
    %7 = vector.broadcast %6 : vector<1x128xf32> to vector<16x128xf32>
    %8 = arith.addf %5, %7 : vector<16x128xf32>
    %cst_6 = arith.constant 5.000000e-01 : f32
    %9 = vector.broadcast %cst_6 : f32 to vector<16x128xf32>
    %10 = arith.mulf %9, %8 : vector<16x128xf32>
    %cst_7 = arith.constant 0.707106769 : f32
    %11 = vector.broadcast %cst_7 : f32 to vector<16x128xf32>
    %12 = arith.mulf %8, %11 : vector<16x128xf32>
    %13 = math.erf %12 : vector<16x128xf32>
    %cst_8 = arith.constant 1.000000e+00 : f32
    %14 = vector.broadcast %cst_8 : f32 to vector<16x128xf32>
    %15 = arith.addf %14, %13 : vector<16x128xf32>
    %16 = arith.mulf %10, %15 : vector<16x128xf32>
    %c0_9 = arith.constant 0 : index
    %c0_10 = arith.constant 0 : index
    %17 = vector.load %arg8[%c0_9, %c0_10] : memref<16x128xf32, #tpu.memory_space<vmem>>, vector<16x128xf32>
    %c0_11 = arith.constant 0 : index
    %c0_12 = arith.constant 0 : index
    %18 = vector.load %arg5[%c0_11, %c0_12] : memref<128x128xf32, #tpu.memory_space<vmem>>, vector<128x128xf32>
    %cst_13 = arith.constant dense<0.000000e+00> : vector<16x128xf32>
    %19 = tpu.matmul %16, %18, %cst_13 {dimension_numbers = #tpu.dot_dimension_numbers<[1], [0], [0], [1], [0, 0, 1, 1], [], []>} : vector<16x128xf32>, vector<128x128xf32>, vector<16x128xf32> -> vector<16x128xf32>
    %20 = arith.addf %17, %19 : vector<16x128xf32>
    %c0_14 = arith.constant 0 : index
    %c0_15 = arith.constant 0 : index
    %21 = vector.load %arg8[%c0_14, %c0_15] : memref<16x128xf32, #tpu.memory_space<vmem>>, vector<16x128xf32>
    tpu.vector_store %arg8[%c0_14, %c0_15], %20 {strides = array<i32>} : memref<16x128xf32, #tpu.memory_space<vmem>>, vector<16x128xf32>,
    %c0_i32_16 = arith.constant 0 : i32
    %22 = arith.cmpi eq, %arg1, %c0_i32_16 : i32
    %23 = arith.extui %22 : i1 to i32
    %c0_i32_17 = arith.constant 0 : i32
    %24 = arith.cmpi ne, %23, %c0_i32_17 : i32
    scf.if %24 {
      %c0_18 = arith.constant 0 : index
      %c0_19 = arith.constant 0 : index
      %25 = vector.load %arg8[%c0_18, %c0_19] : memref<16x128xf32, #tpu.memory_space<vmem>>, vector<16x128xf32>
      %c0_20 = arith.constant 0 : index
      %c0_21 = arith.constant 0 : index
      %26 = vector.load %arg6[%c0_20, %c0_21] : memref<1x128xf32, #tpu.memory_space<vmem>>, vector<1x128xf32>
      %27 = vector.broadcast %26 : vector<1x128xf32> to vector<16x128xf32>
      %28 = arith.addf %25, %27 : vector<16x128xf32>
      %c0_22 = arith.constant 0 : index
      %c0_23 = arith.constant 0 : index
      %29 = vector.load %arg7[%c0_22, %c0_23] : memref<16x128xf32, #tpu.memory_space<vmem>>, vector<16x128xf32>
      tpu.vector_store %arg7[%c0_22, %c0_23], %28 {strides = array<i32>} : memref<16x128xf32, #tpu.memory_space<vmem>>, vector<16x128xf32>,
    } else {
    }
    return
  }
  func.func @transform_0(%arg0: i32, %arg1: i32) -> (i32, i32) {
    %c0_i32 = arith.constant 0 : i32
    %c0_i32_0 = arith.constant 0 : i32
    return %arg0, %c0_i32 : i32, i32
  }
  func.func @transform_1(%arg0: i32, %arg1: i32) -> (i32, i32) {
    %c0_i32 = arith.constant 0 : i32
    %c0_i32_0 = arith.constant 0 : i32
    return %c0_i32, %arg1 : i32, i32
  }
  func.func @transform_2(%arg0: i32, %arg1: i32) -> (i32, i32) {
    %c0_i32 = arith.constant 0 : i32
    %c0_i32_0 = arith.constant 0 : i32
    return %c0_i32, %arg1 : i32, i32
  }
  func.func @transform_3(%arg0: i32, %arg1: i32) -> (i32, i32) {
    %c0_i32 = arith.constant 0 : i32
    %c0_i32_0 = arith.constant 0 : i32
    return %arg1, %c0_i32 : i32, i32
  }
  func.func @transform_4(%arg0: i32, %arg1: i32) -> (i32, i32) {
    %c0_i32 = arith.constant 0 : i32
    %c0_i32_0 = arith.constant 0 : i32
    %c0_i32_1 = arith.constant 0 : i32
    return %c0_i32, %c0_i32_0 : i32, i32
  }
  func.func @transform_5(%arg0: i32, %arg1: i32) -> (i32, i32) {
    %c0_i32 = arith.constant 0 : i32
    %c0_i32_0 = arith.constant 0 : i32
    return %arg0, %c0_i32 : i32, i32
  }
}

</mosaic_0001>

<llo_original>
// kernel: tpu_custom_call.1
$region0: #{tpu_custom_call.1}
  #allocation0 [shape = 'u32[]', space=smem, size = 0x4, offset = 0x4, fixed_abs, tag = 'smem constant byte address 0x4 - core index']
  #allocation1 [shape = 'u32[144,128]{1,0:T(1,128)}', space=vmem, size = 0x12000, scoped, tag = 'internal scratch']
  #allocation2 [shape = 'f32[16,128]{1,0:T(8,128)}', space=vmem, size = 0x2000, scoped, tag = 'scratch operand']
  %s0 = inlined_call_operand.hbm [shape: f32[16,32], index: 0, kind: input, shape index: {}]
  %s1 = inlined_call_operand.hbm [shape: f32[32,128], index: 1, kind: input, shape index: {}]
  %s2 = inlined_call_operand.vmem [shape: f32[1,128], index: 2, kind: input, shape index: {}]
  %s3 = inlined_call_operand.hbm [shape: f32[128,128], index: 3, kind: input, shape index: {}]
  %s4 = inlined_call_operand.vmem [shape: f32[1,128], index: 4, kind: input, shape index: {}]
  %s5 = inlined_call_operand.hbm [shape: f32[16,128], index: 5, kind: output, shape index: {}]
  %s6 = sld [smem:[#allocation0]]
  $region50: #{tpu_custom_call.1} parent=0
    _
  %s8 = ssub.s32 1, %s6
  %s9 = scalar_select 0, %s8, %s6
  $region1: #{tpu_custom_call.1} parent=0
    #allocation3 [shape = 'u8[8192]{0}', space=vmem, size = 0x2000, scoped, tag = 'input window, operand 0, single buffered']
    #allocation4 [shape = 's32[1]{0}', space=sflag, size = 0x4, scoped, tag = 'scoped memory for tpu_custom_call.1']
    #allocation5 [shape = 's32[1]{0}', space=sflag, size = 0x4, scoped, tag = 'scoped memory for tpu_custom_call.1']
    #allocation6 [shape = 'u8[16384]{0}', space=vmem, size = 0x4000, scoped, tag = 'input window, operand 1, single buffered']
    #allocation7 [shape = 's32[1]{0}', space=sflag, size = 0x4, scoped, tag = 'scoped memory for tpu_custom_call.1']
    #allocation8 [shape = 'u8[65536]{0}', space=vmem, size = 0x10000, scoped, tag = 'input window, operand 3, single buffered']
    #allocation9 [shape = 'u8[8192]{0}', space=vmem, size = 0x2000, scoped, tag = 'output window, operand 0, single buffered']
    %10 = vsyncpa [#allocation4], 0
    %11 = vsyncpa [#allocation7], 0
    %12 = vsyncpa [#allocation5], 0
    // Predicated region
    $region2: #{tpu_custom_call.1} parent=1 // pred_check
      _
    $region3: #{tpu_custom_call.1} parent=1 // pred_check_branch
      %14 = sbr.rel (0) target = $region5
    $region4: #{tpu_custom_call.1} parent=1 // pred_region
      %s16 = ssub.s32 256, 256
      %17 = vsyncadd [#allocation4], %s16
      %s18 = sshll.u32 [#allocation3], 4
      %s19 = int_to_ptr.vmem [resolvable:$true] %s18
      %24 = dma.hbm_to_vmem [thread:$0]  %s0, 256, %s19, [#allocation4], 128, 128, 8
    $region5: #{tpu_custom_call.1} parent=1 // pred_fallthru
      _
    // Predicated region
    $region6: #{tpu_custom_call.1} parent=1 // pred_check
      _
    $region7: #{tpu_custom_call.1} parent=1 // pred_check_branch
      %26 = sbr.rel (0) target = $region9
    $region8: #{tpu_custom_call.1} parent=1 // pred_region
      %s28 = ssub.s32 512, 512
      %29 = vsyncadd [#allocation7], %s28
      %s30 = sshll.u32 [#allocation6], 4
      %s31 = int_to_ptr.vmem [resolvable:$true] %s30
      %36 = dma.hbm_to_vmem [thread:$0]  %s1, 512, %s31, [#allocation7], 128, 128, 8
    $region9: #{tpu_custom_call.1} parent=1 // pred_fallthru
      _
    // Predicated region
    $region10: #{tpu_custom_call.1} parent=1 // pred_check
      _
    $region11: #{tpu_custom_call.1} parent=1 // pred_check_branch
      %38 = sbr.rel (0) target = $region13
    $region12: #{tpu_custom_call.1} parent=1 // pred_region
      _
    $region13: #{tpu_custom_call.1} parent=1 // pred_fallthru
      _
    // Predicated region
    $region14: #{tpu_custom_call.1} parent=1 // pred_check
      _
    $region15: #{tpu_custom_call.1} parent=1 // pred_check_branch
      %40 = sbr.rel (0) target = $region17
    $region16: #{tpu_custom_call.1} parent=1 // pred_region
      %s42 = ssub.s32 2048, 2048
      %43 = vsyncadd [#allocation7], %s42
      %s44 = sshll.u32 [#allocation8], 4
      %s45 = int_to_ptr.vmem [resolvable:$true] %s44
      %50 = dma.hbm_to_vmem [thread:$0]  %s3, 2048, %s45, [#allocation7], 128, 128, 8
    $region17: #{tpu_custom_call.1} parent=1 // pred_fallthru
      _
    // Predicated region
    $region18: #{tpu_custom_call.1} parent=1 // pred_check
      _
    $region19: #{tpu_custom_call.1} parent=1 // pred_check_branch
      %52 = sbr.rel (0) target = $region21
    $region20: #{tpu_custom_call.1} parent=1 // pred_region
      _
    $region21: #{tpu_custom_call.1} parent=1 // pred_fallthru
      _
    // Predicated region
    $region22: #{tpu_custom_call.1} parent=1 // pred_check
      _
    $region23: #{tpu_custom_call.1} parent=1 // pred_check_branch
      %54 = sbr.rel (0) target = $region25
    $region24: #{tpu_custom_call.1} parent=1 // pred_region
      %55 = dma.done [#allocation4], 256
    $region25: #{tpu_custom_call.1} parent=1 // pred_fallthru
      _
    // Predicated region
    $region26: #{tpu_custom_call.1} parent=1 // pred_check
      _
    $region27: #{tpu_custom_call.1} parent=1 // pred_check_branch
      %57 = sbr.rel (0) target = $region29
    $region28: #{tpu_custom_call.1} parent=1 // pred_region
      %58 = dma.done [#allocation7], 512
    $region29: #{tpu_custom_call.1} parent=1 // pred_fallthru
      _
    // Predicated region
    $region30: #{tpu_custom_call.1} parent=1 // pred_check
      _
    $region31: #{tpu_custom_call.1} parent=1 // pred_check_branch
      %60 = sbr.rel (0) target = $region33
    $region32: #{tpu_custom_call.1} parent=1 // pred_region
      %61 = dma.done [#allocation7], 2048
    $region33: #{tpu_custom_call.1} parent=1 // pred_fallthru
      _
    %p62 = scmp.eq.s32.totalorder 0, 0
    // Predicated region
    $region34: #{tpu_custom_call.1} parent=1 // pred_check
      %p63 = pneg %p62
    $region35: #{tpu_custom_call.1} parent=1 // pred_check_branch
      %65 = sbr.rel (%p63) target = $region37
    $region36: #{tpu_custom_call.1} parent=1 // pred_region
      %66 = vst [vmem:[#allocation2] sm:$0xff] 0.0
      %67 = vst [vmem:[#allocation2 + $0x8] sm:$0xff] 0.0
    $region37: #{tpu_custom_call.1} parent=1 // pred_fallthru
      _
    %v68 = vld [vmem:[#allocation3] sm:$0xff]
    %v69 = vld [vmem:[#allocation3 + $0x8] sm:$0xff]
    %v70 = vld [vmem:[#allocation6] sm:$0xff]
    %v71 = vld [vmem:[#allocation6 + $0x8] sm:$0xff]
    %v72 = vld [vmem:[#allocation6 + $0x10] sm:$0xff]
    %v73 = vld [vmem:[#allocation6 + $0x18] sm:$0xff]
    %v74 = vld [vmem:[%s2] sm:$0x1]
    %v76 = vlaneseq
    %v77 = vshrl.u32 %v76, 7
    %v78 = vsub.s32 0, %v77
    %v79 = vrot.slane %v74, %v78
    %vm81 = vcmask 261120
    %v83 = vsel %vm81, %v68, 0
    %v86 = vsel %vm81, %v69, 0
    %88 = vmatprep.subr.mxu0 0.0
    %89 = vmatpush1.msra.mxu0 %v70
    %90 = vmatprep.subr.mxu0 0.0
    %91 = vmatpush1.msra.mxu0 %v71
    %92 = vmatprep.subr.mxu0 0.0
    %93 = vmatpush1.msra.mxu0 %v72
    %94 = vmatprep.subr.mxu0 0.0
    %95 = vmatpush1.msra.mxu0 %v73
    %96 = vmatprep.subr.mxu0 0.0
    %97 = vmatpush1.msra.mxu0 0.0
    %98 = vmatprep.subr.mxu0 0.0
    %99 = vmatpush1.msra.mxu0 0.0
    %100 = vmatprep.subr.mxu0 0.0
    %101 = vmatpush1.msra.mxu0 0.0
    %102 = vmatprep.subr.mxu0 0.0
    %103 = vmatpush1.msra.mxu0 0.0
    %104 = vmatprep.subr.mxu0 0.0
    %105 = vmatpush1.msra.mxu0 0.0
    %106 = vmatprep.subr.mxu0 0.0
    %107 = vmatpush1.msra.mxu0 0.0
    %108 = vmatprep.subr.mxu0 0.0
    %109 = vmatpush1.msra.mxu0 0.0
    %110 = vmatprep.subr.mxu0 0.0
    %111 = vmatpush1.msra.mxu0 0.0
    %112 = vmatprep.subr.mxu0 0.0
    %113 = vmatpush1.msra.mxu0 0.0
    %114 = vmatprep.subr.mxu0 0.0
    %115 = vmatpush1.msra.mxu0 0.0
    %116 = vmatprep.subr.mxu0 0.0
    %117 = vmatpush1.msra.mxu0 0.0
    %118 = vmatprep.subr.mxu0 0.0
    %119 = vmatpush1.msra.mxu0 0.0
    %120 = vmatprep.subr.mxu0 0.0
    %121 = vmatpush1.msra.mxu0 0.0
    %122 = vmatprep.subr.mxu0 0.0
    %123 = vmatpush1.msra.mxu0 0.0
    %124 = vmatprep.subr.mxu0 0.0
    %125 = vmatpush1.msra.mxu0 0.0
    %126 = vmatprep.subr.mxu0 0.0
    %127 = vmatpush1.msra.mxu0 0.0
    %128 = vmatprep.subr.mxu0 0.0
    %129 = vmatpush1.msra.mxu0 0.0
    %130 = vmatprep.subr.mxu0 0.0
    %131 = vmatpush1.msra.mxu0 0.0
    %132 = vmatprep.subr.mxu0 0.0
    %133 = vmatpush1.msra.mxu0 0.0
    %134 = vmatprep.subr.mxu0 0.0
    %135 = vmatpush1.msra.mxu0 0.0
    %136 = vmatprep.subr.mxu0 0.0
    %137 = vmatpush1.msra.mxu0 0.0
    %138 = vmatprep.subr.mxu0 0.0
    %139 = vmatpush1.msra.mxu0 0.0
    %140 = vmatprep.subr.mxu0 0.0
    %141 = vmatpush1.msra.mxu0 0.0
    %142 = vmatprep.subr.mxu0 0.0
    %143 = vmatpush1.msra.mxu0 0.0
    %144 = vmatprep.subr.mxu0 0.0
    %145 = vmatpush1.msra.mxu0 0.0
    %146 = vmatprep.subr.mxu0 0.0
    %147 = vmatpush1.msra.mxu0 0.0
    %148 = vmatprep.subr.mxu0 0.0
    %149 = vmatpush1.msra.mxu0 0.0
    %150 = vmatprep.subr.mxu0 0.0
    %151 = vmatpush1.msra.mxu0 0.0
    %152 = vmatprep.mubr.f32.mxu0 0.0
    %153 = vmatmul.mubr.f32.gmra.mrb[0].mxu0 %v83
    %v154 = vpop.f32.mrb[0].mxu0
    %v155 = vadd.f32 %v79, %v154
    %v156 = vpop.f32.mrb[0].mxu0
    %157 = vmatprep.mubr.f32.mxu0 0.0
    %158 = vmatmul.mubr.f32.gmra.mrb[0].mxu0 %v86
    %v159 = vpop.f32.mrb[0].mxu0
    %v160 = vadd.f32 %v79, %v159
    %v161 = vpop.f32.mrb[0].mxu0
    %162 = vdwg.mxu0
    %v163 = vmul.f32 %v155, 0.5
    %v164 = vmul.f32 %v160, 0.5
    %v165 = vmul.f32 %v155, 0.70710677
    %v166 = vmul.f32 %v160, 0.70710677
    %v167 = verf.f32.pop %v165
    %v168 = verf.f32.pop %v166
    %v169 = vadd.f32 %v167, 1.0
    %v170 = vadd.f32 %v168, 1.0
    %v171 = vmul.f32 %v163, %v169
    %v172 = vmul.f32 %v164, %v170
    %v173 = vld [vmem:[#allocation2] sm:$0xff]
    %v174 = vld [vmem:[#allocation2 + $0x8] sm:$0xff]
    %v175 = vld [vmem:[#allocation8] sm:$0xff]
    %v176 = vld [vmem:[#allocation8 + $0x8] sm:$0xff]
    %v177 = vld [vmem:[#allocation8 + $0x10] sm:$0xff]
    %v178 = vld [vmem:[#allocation8 + $0x18] sm:$0xff]
    %v179 = vld [vmem:[#allocation8 + $0x20] sm:$0xff]
    %v180 = vld [vmem:[#allocation8 + $0x28] sm:$0xff]
    %v181 = vld [vmem:[#allocation8 + $0x30] sm:$0xff]
    %v182 = vld [vmem:[#allocation8 + $0x38] sm:$0xff]
    %v183 = vld [vmem:[#allocation8 + $0x40] sm:$0xff]
    %v184 = vld [vmem:[#allocation8 + $0x48] sm:$0xff]
    %v185 = vld [vmem:[#allocation8 + $0x50] sm:$0xff]
    %v186 = vld [vmem:[#allocation8 + $0x58] sm:$0xff]
    %v187 = vld [vmem:[#allocation8 + $0x60] sm:$0xff]
    %v188 = vld [vmem:[#allocation8 + $0x68] sm:$0xff]
    %v189 = vld [vmem:[#allocation8 + $0x70] sm:$0xff]
    %v190 = vld [vmem:[#allocation8 + $0x78] sm:$0xff]
    %191 = vmatprep.subr.mxu0 0.0
    %192 = vmatpush1.msra.mxu0 %v175
    %193 = vmatprep.subr.mxu0 0.0
    %194 = vmatpush1.msra.mxu0 %v176
    %195 = vmatprep.subr.mxu0 0.0
    %196 = vmatpush1.msra.mxu0 %v177
    %197 = vmatprep.subr.mxu0 0.0
    %198 = vmatpush1.msra.mxu0 %v178
    %199 = vmatprep.subr.mxu0 0.0
    %200 = vmatpush1.msra.mxu0 %v179
    %201 = vmatprep.subr.mxu0 0.0
    %202 = vmatpush1.msra.mxu0 %v180
    %203 = vmatprep.subr.mxu0 0.0
    %204 = vmatpush1.msra.mxu0 %v181
    %205 = vmatprep.subr.mxu0 0.0
    %206 = vmatpush1.msra.mxu0 %v182
    %207 = vmatprep.subr.mxu0 0.0
    %208 = vmatpush1.msra.mxu0 %v183
    %209 = vmatprep.subr.mxu0 0.0
    %210 = vmatpush1.msra.mxu0 %v184
    %211 = vmatprep.subr.mxu0 0.0
    %212 = vmatpush1.msra.mxu0 %v185
    %213 = vmatprep.subr.mxu0 0.0
    %214 = vmatpush1.msra.mxu0 %v186
    %215 = vmatprep.subr.mxu0 0.0
    %216 = vmatpush1.msra.mxu0 %v187
    %217 = vmatprep.subr.mxu0 0.0
    %218 = vmatpush1.msra.mxu0 %v188
    %219 = vmatprep.subr.mxu0 0.0
    %220 = vmatpush1.msra.mxu0 %v189
    %221 = vmatprep.subr.mxu0 0.0
    %222 = vmatpush1.msra.mxu0 %v190
    %223 = vmatprep.subr.mxu0 0.0
    %224 = vmatpush1.msra.mxu0 0.0
    %225 = vmatprep.subr.mxu0 0.0
    %226 = vmatpush1.msra.mxu0 0.0
    %227 = vmatprep.subr.mxu0 0.0
    %228 = vmatpush1.msra.mxu0 0.0
    %229 = vmatprep.subr.mxu0 0.0
    %230 = vmatpush1.msra.mxu0 0.0
    %231 = vmatprep.subr.mxu0 0.0
    %232 = vmatpush1.msra.mxu0 0.0
    %233 = vmatprep.subr.mxu0 0.0
    %234 = vmatpush1.msra.mxu0 0.0
    %235 = vmatprep.subr.mxu0 0.0
    %236 = vmatpush1.msra.mxu0 0.0
    %237 = vmatprep.subr.mxu0 0.0
    %238 = vmatpush1.msra.mxu0 0.0
    %239 = vmatprep.subr.mxu0 0.0
    %240 = vmatpush1.msra.mxu0 0.0
    %241 = vmatprep.subr.mxu0 0.0
    %242 = vmatpush1.msra.mxu0 0.0
    %243 = vmatprep.subr.mxu0 0.0
    %244 = vmatpush1.msra.mxu0 0.0
    %245 = vmatprep.subr.mxu0 0.0
    %246 = vmatpush1.msra.mxu0 0.0
    %247 = vmatprep.subr.mxu0 0.0
    %248 = vmatpush1.msra.mxu0 0.0
    %249 = vmatprep.subr.mxu0 0.0
    %250 = vmatpush1.msra.mxu0 0.0
    %251 = vmatprep.subr.mxu0 0.0
    %252 = vmatpush1.msra.mxu0 0.0
    %253 = vmatprep.subr.mxu0 0.0
    %254 = vmatpush1.msra.mxu0 0.0
    %255 = vmatprep.mubr.f32.mxu0 0.0
    %256 = vmatmul.mubr.f32.gmra.mrb[0].mxu0 %v171
    %v257 = vpop.f32.mrb[0].mxu0
    %v258 = vadd.f32 0.0, %v257
    %v259 = vpop.f32.mrb[0].mxu0
    %260 = vmatprep.mubr.f32.mxu0 0.0
    %261 = vmatmul.mubr.f32.gmra.mrb[0].mxu0 %v172
    %v262 = vpop.f32.mrb[0].mxu0
    %v263 = vadd.f32 0.0, %v262
    %v264 = vpop.f32.mrb[0].mxu0
    %265 = vdwg.mxu0
    %v266 = vadd.f32 %v173, %v258
    %v267 = vadd.f32 %v174, %v263
    %268 = vst [vmem:[#allocation2] sm:$0xff] %v266
    %269 = vst [vmem:[#allocation2 + $0x8] sm:$0xff] %v267
    // Predicated region
    $region38: #{tpu_custom_call.1} parent=1 // pred_check
      %p270 = pneg %p62
    $region39: #{tpu_custom_call.1} parent=1 // pred_check_branch
      %272 = sbr.rel (%p270) target = $region41
    $region40: #{tpu_custom_call.1} parent=1 // pred_region
      %v273 = vld [vmem:[#allocation2] sm:$0xff]
      %v274 = vld [vmem:[#allocation2 + $0x8] sm:$0xff]
      %v275 = vld [vmem:[%s4] sm:$0x1]
      %v277 = vlaneseq
      %v278 = vshrl.u32 %v277, 7
      %v279 = vsub.s32 0, %v278
      %v280 = vrot.slane %v275, %v279
      %v282 = vadd.f32 %v273, %v280
      %v283 = vadd.f32 %v274, %v280
      %284 = vst [vmem:[#allocation9] sm:$0xff] %v282
      %285 = vst [vmem:[#allocation9 + $0x8] sm:$0xff] %v283
    $region41: #{tpu_custom_call.1} parent=1 // pred_fallthru
      _
    // Predicated region
    $region42: #{tpu_custom_call.1} parent=1 // pred_check
      _
    $region43: #{tpu_custom_call.1} parent=1 // pred_check_branch
      %287 = sbr.rel (0) target = $region45
    $region44: #{tpu_custom_call.1} parent=1 // pred_region
      %s289 = ssub.s32 256, 256
      %290 = vsyncadd [#allocation5], %s289
      %s291 = sshll.u32 [#allocation9], 4
      %s292 = int_to_ptr.vmem [resolvable:$true] %s291
      %297 = dma.vmem_to_hbm [thread:$0]  %s292, 256, %s5, [#allocation5], 128, 128, 8
    $region45: #{tpu_custom_call.1} parent=1 // pred_fallthru
      _
    // Predicated region
    $region46: #{tpu_custom_call.1} parent=1 // pred_check
      _
    $region47: #{tpu_custom_call.1} parent=1 // pred_check_branch
      %299 = sbr.rel (0) target = $region49
    $region48: #{tpu_custom_call.1} parent=1 // pred_region
      %300 = dma.done [#allocation5], 256
    $region49: #{tpu_custom_call.1} parent=1 // pred_fallthru
      _
    %301 = vsyncpa [#allocation4], 1
    %302 = vsyncpa [#allocation7], 1
    %303 = vsyncpa [#allocation5], 1

</llo_original>
